<compile_context>
chip_gen: v5e
topology: v5e:2x2
jax: 0.10.0
libtpu: 0.0.40
codegen_flags: <defaults>
</compile_context>

<pallas_src>
import functools

import jax
import jax.numpy as jnp
from jax import lax
from jax.experimental import pallas as pl
from jax.experimental.pallas import tpu as pltpu


def _round_up(x, m):
    return ((x + m - 1) // m) * m


# ---------------------------------------------------------------------------
# Kernel: one TemporalBlock on a (1, TL, C) time tile.
# ---------------------------------------------------------------------------
def _tblock_kernel(*refs, K, dil, pad, TL, has_downsample, im2col):
    """Fused causal conv1+ReLU -> causal conv2+ReLU -> (+residual) -> ReLU.

    refs layout (has_downsample=True, pad>0):
        x_ref  (1, TL, Cin_p)      current input time tile (compute dtype)
        w1_ref (K*Cin_p, Cout_p)   conv1 im2col weight (compute dtype)
        b1_ref (1, Cout_p)         f32 bias
        w2_ref (K*Cout_p, Cout_p)  conv2 im2col weight
        b2_ref (1, Cout_p)         f32 bias
        wd_ref (Cin_p, Cout_p)     1x1 downsample weight   [only if downsample]
        bd_ref (1, Cout_p)         f32 downsample bias     [only if downsample]
        o_ref  (1, TL, Cout_p)     output tile
        xh_ref (pad, Cin_p)        causal halo of x   (compute dtype scratch)
        hh_ref (pad, Cout_p)       causal halo of conv1 activation
    """
    n_in = 7 if has_downsample else 5
    x_ref, w1_ref, b1_ref, w2_ref, b2_ref = refs[:5]
    wd_ref, bd_ref = (refs[5], refs[6]) if has_downsample else (None, None)
    o_ref = refs[n_in]
    xh_ref, hh_ref = (refs[n_in + 1], refs[n_in + 2]) if pad > 0 else (None, None)

    t = pl.program_id(1)                 # sequential ("arbitrary") time axis
    cin_p = x_ref.shape[-1]
    cout_p = o_ref.shape[-1]
    mm_dtype = w1_ref.dtype              # matmul input dtype (bf16 or f32)

    def taps(halo, tile):
        """K dilated causal taps of (halo ‖ tile), each (TL, C) value.

        Tap k reaches `pad - k*dil` rows into the halo; the newest tap (k=K-1)
        is exactly `tile` so it costs nothing.  TL >= pad is guaranteed by the
        wrapper, so every tap is a single (halo-slice ‖ tile-prefix) concat.
        """
        out = []
        for k in range(K):
            off = pad - k * dil
            if off == 0:
                out.append(tile)
            else:
                out.append(jnp.concatenate(
                    [halo[pad - off:pad, :], tile[:TL - off, :]], axis=0))
        return out

    def causal_conv(halo, tile, w_ref, b_ref, cdim):
        """Dilated causal conv + bias + ReLU -> f32 (TL, Cout_p)."""
        tps = taps(halo, tile)
        if im2col:
            # One wide MXU matmul (contraction depth K*C) — best on v6e/v7x.
            cols = tps[0] if K == 1 else jnp.concatenate(tps, axis=-1)
            acc = jnp.dot(cols, w_ref[...], preferred_element_type=jnp.float32)
        else:
            # K accumulated 128-deep matmuls — preferred on v5e's 128x128 MXU.
            acc = jnp.zeros((TL, w_ref.shape[-1]), jnp.float32)
            for k in range(K):
                acc = acc + jnp.dot(tps[k], w_ref[k * cdim:(k + 1) * cdim, :],
                                    preferred_element_type=jnp.float32)
        return jnp.maximum(acc + b_ref[...], 0.0)

    x_tile = x_ref[0]                                    # (TL, Cin_p) value

    if pad > 0:
        # First time tile of each batch row: zero the causal halos only.
        @pl.when(t == 0)
        def _():
            xh_ref[...] = jnp.zeros_like(xh_ref)
            hh_ref[...] = jnp.zeros_like(hh_ref)
        x_halo = xh_ref[...]                             # previous-tile context
        xh_ref[...] = x_tile[TL - pad:TL, :]             # carry for next tile
    else:
        x_halo = None

    # ---- conv1 (dilated causal) + ReLU --------------------------------------
    h1 = causal_conv(x_halo, x_tile, w1_ref, b1_ref, cin_p)   # f32
    # TODO(synk): dropout1 is identity (eval-mode forward only).
    h1_c = h1.astype(mm_dtype)

    if pad > 0:
        h_halo = hh_ref[...]
        hh_ref[...] = h1_c[TL - pad:TL, :]               # carry for next tile
    else:
        h_halo = None

    # ---- conv2 (dilated causal) + ReLU --------------------------------------
    h2 = causal_conv(h_halo, h1_c, w2_ref, b2_ref, cout_p)    # f32
    # TODO(synk): dropout2 is identity (eval-mode forward only).

    # ---- residual branch + final ReLU ---------------------------------------
    if has_downsample:
        res = jnp.dot(x_tile, wd_ref[...],
                      preferred_element_type=jnp.float32) + bd_ref[...]
    else:
        res = x_tile.astype(jnp.float32)

    o_ref[0] = jnp.maximum(h2 + res, 0.0).astype(o_ref.dtype)


# ---------------------------------------------------------------------------
# One TemporalBlock = one pallas_call.
# ---------------------------------------------------------------------------
def _temporal_block_pallas(x_blc, layer, *, K, dil, tl, im2col=True):
    """x_blc: (B, L_p, Cin_p) lane-padded activations. Returns (B, L_p, Cout_p)."""
    B, L_p, cin_p = x_blc.shape
    cout_p = layer["w1"].shape[-1]
    pad = (K - 1) * dil
    assert tl >= pad and L_p % tl == 0, (tl, pad, L_p)
    n_t = L_p // tl
    has_ds = "wd" in layer
    cdt = x_blc.dtype
    itemsize = jnp.dtype(cdt).itemsize

    weight_keys = ["w1", "b1", "w2", "b2"] + (["wd", "bd"] if has_ds else [])
    weights = [layer[k] for k in weight_keys]
    wbytes = sum(int(w.size) * w.dtype.itemsize for w in weights)

    # Grid-invariant weights: single-buffer them only when double-buffering
    # would meaningfully eat VMEM (v7x has 64 MiB).  Fall back silently if this
    # Pallas version does not support pipeline_mode.
    single_buffer = wbytes > (2 << 20)

    def const_spec(shape):
        idx = lambda b, t, _s=shape: (0,) * len(_s)
        if single_buffer and hasattr(pl, "Buffered"):
            try:
                return pl.BlockSpec(shape, idx, pipeline_mode=pl.Buffered(1))
            except TypeError:
                pass
        return pl.BlockSpec(shape, idx)

    in_specs = [pl.BlockSpec((1, tl, cin_p), lambda b, t: (b, t, 0))]
    in_specs += [const_spec(w.shape) for w in weights]
    args = [x_blc] + weights

    scratch = []
    if pad > 0:
        scratch = [pltpu.VMEM((pad, cin_p), cdt),    # x causal halo
                   pltpu.VMEM((pad, cout_p), cdt)]   # conv1-act causal halo

    # Cost hint + right-sized VMEM limit (tiles x buffers + weights + halo
    # scratch + f32 working set, x2 headroom; review: no hard-coded 48 MiB).
    flops = 2 * B * L_p * (K * cin_p * cout_p + K * cout_p * cout_p
                           + (cin_p * cout_p if has_ds else 0))
    bytes_accessed = B * L_p * (cin_p + cout_p) * itemsize + wbytes

    wbuf = 1 if single_buffer else 2
    io_bytes = 2 * tl * (cin_p + cout_p) * itemsize            # dbl-buffered tiles
    scratch_bytes = pad * (cin_p + cout_p) * itemsize
    work_bytes = tl * K * (cin_p + cout_p) * max(itemsize, 4) + 4 * tl * cout_p * 4
    need = io_bytes + wbuf * wbytes + scratch_bytes + work_bytes
    vmem_limit = int(min(96 << 20, max(16 << 20, 2 * need + (4 << 20))))

    return pl.pallas_call(
        functools.partial(_tblock_kernel, K=K, dil=dil, pad=pad, TL=tl,
                          has_downsample=has_ds, im2col=im2col),
        out_shape=jax.ShapeDtypeStruct((B, L_p, cout_p), cdt),
        grid=(B, n_t),
        in_specs=in_specs,
        out_specs=pl.BlockSpec((1, tl, cout_p), lambda b, t: (b, t, 0)),
        scratch_shapes=scratch,
        compiler_params=pltpu.CompilerParams(
            dimension_semantics=("parallel", "arbitrary"),
            vmem_limit_bytes=vmem_limit),
        cost_estimate=pl.CostEstimate(flops=int(flops), transcendentals=0,
                                      bytes_accessed=int(bytes_accessed)),
    )(*args)


# ---------------------------------------------------------------------------
# Full TemporalConvNet forward (chain of TemporalBlocks).
# ---------------------------------------------------------------------------
def temporal_conv_net_pallas(x_ncl, layer_params, *, kernel_size, tile_l=512,
                             compute_dtype=jnp.bfloat16, im2col=True):
    """x_ncl: (B, num_inputs, L) like PyTorch. Returns (B, num_channels[-1], L).

    layer_params: per-layer dict of effective (weight-norm-folded) params:
        {"w1": (Cout,Cin,K), "b1": (Cout,), "w2": (Cout,Cout,K), "b2": (Cout,),
         optionally "wd": (Cout,Cin), "bd": (Cout,)}  # only when Cin != Cout

    im2col=True: one wide MXU matmul per conv (v6e/v7x). Set False on v5e
    (128-deep MXU) to use K accumulated matmuls instead.
    """
    B, c_in0, L = x_ncl.shape
    K = kernel_size
    n_layers = len(layer_params)

    # One time tile for all layers: multiple of 16 (bf16 sublane packing),
    # >= the deepest layer's causal pad so halo carry never exceeds the tile,
    # and not (needlessly) larger than the sequence itself.
    max_pad = (K - 1) * (2 ** (n_layers - 1)) if n_layers else 0
    tl = min(max(int(tile_l), 16), _round_up(L, 16))
    tl = _round_up(max(tl, max_pad, 16), 16)
    L_p = _round_up(L, tl)   # trailing pad only: never affects causal outputs

    # Layout plumbing (plain-JAX glue, once per network call):
    # NCL -> (B, L, C) so channels sit on the 128-lane axis; lane-pad channels.
    x = jnp.transpose(x_ncl, (0, 2, 1)).astype(compute_dtype)
    cin_p = _round_up(c_in0, 128)
    x = jnp.pad(x, ((0, 0), (0, L_p - L), (0, cin_p - c_in0)))

    for i, p in enumerate(layer_params):
        dil = 2 ** i
        c_out, c_in = p["w1"].shape[0], p["w1"].shape[1]
        ci_p = _round_up(c_in, 128)
        co_p = _round_up(c_out, 128)

        def conv_w(w, ci, co):
            # (Cout, Cin, K) -> zero-padded, im2col-ordered (K*Cin_p, Cout_p)
            w = jnp.pad(w, ((0, co - w.shape[0]), (0, ci - w.shape[1]), (0, 0)))
            return (jnp.transpose(w, (2, 1, 0)).reshape(K * ci, co)
                    .astype(compute_dtype))

        def vec(b, co):
            return jnp.pad(b, (0, co - b.shape[0])).reshape(1, co).astype(jnp.float32)

        layer = {
            "w1": conv_w(p["w1"], ci_p, co_p), "b1": vec(p["b1"], co_p),
            "w2": conv_w(p["w2"], co_p, co_p), "b2": vec(p["b2"], co_p),
        }
        if "wd" in p and p["wd"] is not None:
            wd = jnp.pad(p["wd"], ((0, co_p - c_out), (0, ci_p - c_in)))
            layer["wd"] = jnp.transpose(wd, (1, 0)).astype(compute_dtype)
            layer["bd"] = vec(p["bd"], co_p)

        x = _temporal_block_pallas(x, layer, K=K, dil=dil, tl=tl, im2col=im2col)

    c_last = layer_params[-1]["w1"].shape[0]
    out = x[:, :L, :c_last].astype(jnp.float32)
    return jnp.transpose(out, (0, 2, 1))  # back to (B, C, L)


# ---------------------------------------------------------------------------
# Pure-JAX reference (PyTorch semantics, NCL, f32) for verification.
# ---------------------------------------------------------------------------
def _ref_block(x, p, *, pad, dil):
    def causal_conv(inp, w, b):
        y = lax.conv_general_dilated(
            inp, w, window_strides=(1,), padding=[(pad, pad)],
            rhs_dilation=(dil,), dimension_numbers=('NCH', 'OIH', 'NCH'))
        if pad > 0:
            y = y[:, :, :-pad]                  # Chomp1d
        return y + b[None, :, None]

    h = jnp.maximum(causal_conv(x, p["w1"], p["b1"]), 0.0)
    h = jnp.maximum(causal_conv(h, p["w2"], p["b2"]), 0.0)
    if "wd" in p:
        res = lax.conv_general_dilated(
            x, p["wd"][:, :, None], window_strides=(1,), padding=[(0, 0)],
            dimension_numbers=('NCH', 'OIH', 'NCH')) + p["bd"][None, :, None]
    else:
        res = x
    return jnp.maximum(h + res, 0.0)


def _ref_forward(x, layer_params, *, kernel_size):
    for i, p in enumerate(layer_params):
        dil = 2 ** i
        x = _ref_block(x, p, pad=(kernel_size - 1) * dil, dil=dil)
    return x


def _weight_norm(v, g):
    # w = g * v / ||v||, norm per output channel over (Cin, K) (torch dim=0)
    norm = jnp.sqrt(jnp.sum(v * v, axis=(1, 2), keepdims=True))
    return g[:, None, None] * v / norm


if __name__ == "__main__":
    # TemporalConvNet(num_inputs=4, num_channels=[8, 8], kernel_size=2)
    B, L = 2, 32
    num_inputs = 4
    num_channels = [8, 8]
    K = 2

    key = jax.random.PRNGKey(0)
    key, kx = jax.random.split(key)
    x = jax.random.normal(kx, (B, num_inputs, L), jnp.float32)

    layer_params = []
    c_in = num_inputs
    for c_out in num_channels:
        key, k1, k2, k3, k4, k5, k6, k7, k8 = jax.random.split(key, 9)
        v1 = jax.random.normal(k1, (c_out, c_in, K), jnp.float32) * 0.05
        g1 = jnp.abs(jax.random.normal(k2, (c_out,), jnp.float32)) + 0.5
        b1 = jax.random.normal(k3, (c_out,), jnp.float32) * 0.1
        v2 = jax.random.normal(k4, (c_out, c_out, K), jnp.float32) * 0.05
        g2 = jnp.abs(jax.random.normal(k5, (c_out,), jnp.float32)) + 0.5
        b2 = jax.random.normal(k6, (c_out,), jnp.float32) * 0.1
        p = {"w1": _weight_norm(v1, g1), "b1": b1,
             "w2": _weight_norm(v2, g2), "b2": b2}
        if c_in != c_out:   # PyTorch: downsample only when n_inputs != n_outputs
            p["wd"] = jax.random.normal(k7, (c_out, c_in), jnp.float32) * 0.01
            p["bd"] = jax.random.normal(k8, (c_out,), jnp.float32) * 0.1
        layer_params.append(p)
        c_in = c_out

    ref = _ref_forward(x, layer_params, kernel_size=K)

    # f32 compute path, tile_l=16 -> two time tiles per batch row, so the
    # carried causal halo across the sequential grid axis is exercised.
    out_f32 = jax.block_until_ready(
        temporal_conv_net_pallas(x, layer_params, kernel_size=K, tile_l=16,
                                 compute_dtype=jnp.float32))
    assert out_f32.shape == (B, num_channels[-1], L), out_f32.shape
    assert jnp.allclose(out_f32, ref, atol=1e-3, rtol=1e-3), \
        float(jnp.max(jnp.abs(out_f32 - ref)))

    # Per-tap accumulated matmuls (v5e mode), f32, tight check.
    out_tap = jax.block_until_ready(
        temporal_conv_net_pallas(x, layer_params, kernel_size=K, tile_l=16,
                                 compute_dtype=jnp.float32, im2col=False))
    assert jnp.allclose(out_tap, ref, atol=1e-3, rtol=1e-3), \
        float(jnp.max(jnp.abs(out_tap - ref)))

    # bf16 matmul inputs / f32 accumulation (high-MXU-rate path), halo exercised.
    out_bf16 = jax.block_until_ready(
        temporal_conv_net_pallas(x, layer_params, kernel_size=K, tile_l=16,
                                 compute_dtype=jnp.bfloat16))
    assert out_bf16.shape == (B, num_channels[-1], L), out_bf16.shape
    assert jnp.allclose(out_bf16, ref, atol=1e-1, rtol=1e-1), \
        float(jnp.max(jnp.abs(out_bf16 - ref)))

    # Default config (bf16, big tile -> single time tile here).
    out_def = jax.block_until_ready(
        temporal_conv_net_pallas(x, layer_params, kernel_size=K))
    assert jnp.allclose(out_def, ref, atol=1e-1, rtol=1e-1), \
        float(jnp.max(jnp.abs(out_def - ref)))

    print("KERNEL_OK")
</pallas_src>

<mosaic_0001>
module attributes {stable_mosaic.version = 11 : i64} {
  func.func @_tblock_kernel(%arg0: i32, %arg1: i32, %arg2: memref<1x16x128xf32, #tpu.memory_space<vmem>>, %arg3: memref<256x128xf32, #tpu.memory_space<vmem>>, %arg4: memref<1x128xf32, #tpu.memory_space<vmem>>, %arg5: memref<256x128xf32, #tpu.memory_space<vmem>>, %arg6: memref<1x128xf32, #tpu.memory_space<vmem>>, %arg7: memref<128x128xf32, #tpu.memory_space<vmem>>, %arg8: memref<1x128xf32, #tpu.memory_space<vmem>>, %arg9: memref<1x16x128xf32, #tpu.memory_space<vmem>>, %arg10: memref<1x128xf32, #tpu.memory_space<vmem>>, %arg11: memref<1x128xf32, #tpu.memory_space<vmem>>) attributes {dimension_semantics = [#tpu.dimension_semantics<parallel>, #tpu.dimension_semantics<arbitrary>], iteration_bounds = array<i64: 2, 2>, scalar_prefetch = 0 : i64, scratch_operands = 2 : i64, tpu.core_type = #tpu.core_type<tc>, window_params = [{transform_indices = @transform_0, window_bounds = array<i64: 1, 16, 128>}, {pipeline_mode = #tpu.pipeline_mode<synchronous>, transform_indices = @transform_1, window_bounds = array<i64: 256, 128>}, {pipeline_mode = #tpu.pipeline_mode<synchronous>, transform_indices = @transform_2, window_bounds = array<i64: 1, 128>}, {pipeline_mode = #tpu.pipeline_mode<synchronous>, transform_indices = @transform_3, window_bounds = array<i64: 256, 128>}, {pipeline_mode = #tpu.pipeline_mode<synchronous>, transform_indices = @transform_4, window_bounds = array<i64: 1, 128>}, {pipeline_mode = #tpu.pipeline_mode<synchronous>, transform_indices = @transform_5, window_bounds = array<i64: 128, 128>}, {pipeline_mode = #tpu.pipeline_mode<synchronous>, transform_indices = @transform_6, window_bounds = array<i64: 1, 128>}, {transform_indices = @transform_7, window_bounds = array<i64: 1, 16, 128>}]} {
    %c0 = arith.constant 0 : index
    %c0_0 = arith.constant 0 : index
    %c0_1 = arith.constant 0 : index
    %0 = vector.load %arg2[%c0, %c0_0, %c0_1] : memref<1x16x128xf32, #tpu.memory_space<vmem>>, vector<1x16x128xf32>
    %1 = vector.shape_cast %0 : vector<1x16x128xf32> to vector<16x128xf32>
    %c0_i32 = arith.constant 0 : i32
    %2 = arith.cmpi eq, %arg1, %c0_i32 : i32
    %3 = arith.extui %2 : i1 to i32
    %c0_i32_2 = arith.constant 0 : i32
    %4 = arith.cmpi ne, %3, %c0_i32_2 : i32
    scf.if %4 {
      %cst_31 = arith.constant 0.000000e+00 : f32
      %42 = vector.broadcast %cst_31 : f32 to vector<1x128xf32>
      %c0_32 = arith.constant 0 : index
      %c0_33 = arith.constant 0 : index
      %43 = vector.load %arg10[%c0_32, %c0_33] : memref<1x128xf32, #tpu.memory_space<vmem>>, vector<1x128xf32>
      tpu.vector_store %arg10[%c0_32, %c0_33], %42 {strides = array<i32>} : memref<1x128xf32, #tpu.memory_space<vmem>>, vector<1x128xf32>,
      %cst_34 = arith.constant 0.000000e+00 : f32
      %44 = vector.broadcast %cst_34 : f32 to vector<1x128xf32>
      %c0_35 = arith.constant 0 : index
      %c0_36 = arith.constant 0 : index
      %45 = vector.load %arg11[%c0_35, %c0_36] : memref<1x128xf32, #tpu.memory_space<vmem>>, vector<1x128xf32>
      tpu.vector_store %arg11[%c0_35, %c0_36], %44 {strides = array<i32>} : memref<1x128xf32, #tpu.memory_space<vmem>>, vector<1x128xf32>,
    } else {
    }
    %c0_3 = arith.constant 0 : index
    %c0_4 = arith.constant 0 : index
    %5 = vector.load %arg10[%c0_3, %c0_4] : memref<1x128xf32, #tpu.memory_space<vmem>>, vector<1x128xf32>
    %6 = vector.extract_strided_slice %1 {offsets = [15, 0], sizes = [1, 128], strides = [1, 1]} : vector<16x128xf32> to vector<1x128xf32>
    %c0_5 = arith.constant 0 : index
    %c0_6 = arith.constant 0 : index
    %7 = vector.load %arg10[%c0_5, %c0_6] : memref<1x128xf32, #tpu.memory_space<vmem>>, vector<1x128xf32>
    tpu.vector_store %arg10[%c0_5, %c0_6], %6 {strides = array<i32>} : memref<1x128xf32, #tpu.memory_space<vmem>>, vector<1x128xf32>,
    %8 = vector.extract_strided_slice %1 {offsets = [0, 0], sizes = [15, 128], strides = [1, 1]} : vector<16x128xf32> to vector<15x128xf32>
    %9 = tpu.concatenate %5, %8 in 0 : vector<1x128xf32>, vector<15x128xf32> -> vector<16x128xf32>
    %10 = tpu.concatenate %9, %1 in 1 : vector<16x128xf32>, vector<16x128xf32> -> vector<16x256xf32>
    %c0_7 = arith.constant 0 : index
    %c0_8 = arith.constant 0 : index
    %11 = vector.load %arg3[%c0_7, %c0_8] : memref<256x128xf32, #tpu.memory_space<vmem>>, vector<256x128xf32>
    %cst = arith.constant dense<0.000000e+00> : vector<16x128xf32>
    %12 = tpu.matmul %10, %11, %cst {dimension_numbers = #tpu.dot_dimension_numbers<[1], [0], [0], [1], [0, 0, 1, 1], [], []>} : vector<16x256xf32>, vector<256x128xf32>, vector<16x128xf32> -> vector<16x128xf32>
    %c0_9 = arith.constant 0 : index
    %c0_10 = arith.constant 0 : index
    %13 = vector.load %arg4[%c0_9, %c0_10] : memref<1x128xf32, #tpu.memory_space<vmem>>, vector<1x128xf32>
    %14 = vector.broadcast %13 : vector<1x128xf32> to vector<16x128xf32>
    %15 = arith.addf %12, %14 : vector<16x128xf32>
    %cst_11 = arith.constant 0.000000e+00 : f32
    %16 = vector.broadcast %cst_11 : f32 to vector<16x128xf32>
    %17 = arith.maximumf %15, %16 : vector<16x128xf32>
    %c0_12 = arith.constant 0 : index
    %c0_13 = arith.constant 0 : index
    %18 = vector.load %arg11[%c0_12, %c0_13] : memref<1x128xf32, #tpu.memory_space<vmem>>, vector<1x128xf32>
    %19 = vector.extract_strided_slice %17 {offsets = [15, 0], sizes = [1, 128], strides = [1, 1]} : vector<16x128xf32> to vector<1x128xf32>
    %c0_14 = arith.constant 0 : index
    %c0_15 = arith.constant 0 : index
    %20 = vector.load %arg11[%c0_14, %c0_15] : memref<1x128xf32, #tpu.memory_space<vmem>>, vector<1x128xf32>
    tpu.vector_store %arg11[%c0_14, %c0_15], %19 {strides = array<i32>} : memref<1x128xf32, #tpu.memory_space<vmem>>, vector<1x128xf32>,
    %21 = vector.extract_strided_slice %17 {offsets = [0, 0], sizes = [15, 128], strides = [1, 1]} : vector<16x128xf32> to vector<15x128xf32>
    %22 = tpu.concatenate %18, %21 in 0 : vector<1x128xf32>, vector<15x128xf32> -> vector<16x128xf32>
    %23 = tpu.concatenate %22, %17 in 1 : vector<16x128xf32>, vector<16x128xf32> -> vector<16x256xf32>
    %c0_16 = arith.constant 0 : index
    %c0_17 = arith.constant 0 : index
    %24 = vector.load %arg5[%c0_16, %c0_17] : memref<256x128xf32, #tpu.memory_space<vmem>>, vector<256x128xf32>
    %cst_18 = arith.constant dense<0.000000e+00> : vector<16x128xf32>
    %25 = tpu.matmul %23, %24, %cst_18 {dimension_numbers = #tpu.dot_dimension_numbers<[1], [0], [0], [1], [0, 0, 1, 1], [], []>} : vector<16x256xf32>, vector<256x128xf32>, vector<16x128xf32> -> vector<16x128xf32>
    %c0_19 = arith.constant 0 : index
    %c0_20 = arith.constant 0 : index
    %26 = vector.load %arg6[%c0_19, %c0_20] : memref<1x128xf32, #tpu.memory_space<vmem>>, vector<1x128xf32>
    %27 = vector.broadcast %26 : vector<1x128xf32> to vector<16x128xf32>
    %28 = arith.addf %25, %27 : vector<16x128xf32>
    %cst_21 = arith.constant 0.000000e+00 : f32
    %29 = vector.broadcast %cst_21 : f32 to vector<16x128xf32>
    %30 = arith.maximumf %28, %29 : vector<16x128xf32>
    %c0_22 = arith.constant 0 : index
    %c0_23 = arith.constant 0 : index
    %31 = vector.load %arg7[%c0_22, %c0_23] : memref<128x128xf32, #tpu.memory_space<vmem>>, vector<128x128xf32>
    %cst_24 = arith.constant dense<0.000000e+00> : vector<16x128xf32>
    %32 = tpu.matmul %1, %31, %cst_24 {dimension_numbers = #tpu.dot_dimension_numbers<[1], [0], [0], [1], [0, 0, 1, 1], [], []>} : vector<16x128xf32>, vector<128x128xf32>, vector<16x128xf32> -> vector<16x128xf32>
    %c0_25 = arith.constant 0 : index
    %c0_26 = arith.constant 0 : index
    %33 = vector.load %arg8[%c0_25, %c0_26] : memref<1x128xf32, #tpu.memory_space<vmem>>, vector<1x128xf32>
    %34 = vector.broadcast %33 : vector<1x128xf32> to vector<16x128xf32>
    %35 = arith.addf %32, %34 : vector<16x128xf32>
    %36 = arith.addf %30, %35 : vector<16x128xf32>
    %cst_27 = arith.constant 0.000000e+00 : f32
    %37 = vector.broadcast %cst_27 : f32 to vector<16x128xf32>
    %38 = arith.maximumf %36, %37 : vector<16x128xf32>
    %c0_28 = arith.constant 0 : index
    %c0_29 = arith.constant 0 : index
    %c0_30 = arith.constant 0 : index
    %39 = vector.load %arg9[%c0_28, %c0_29, %c0_30] : memref<1x16x128xf32, #tpu.memory_space<vmem>>, vector<1x16x128xf32>
    %40 = vector.shape_cast %39 : vector<1x16x128xf32> to vector<16x128xf32>
    %41 = vector.shape_cast %38 : vector<16x128xf32> to vector<1x16x128xf32>
    tpu.vector_store %arg9[%c0_28, %c0_29, %c0_30], %41 {strides = array<i32>} : memref<1x16x128xf32, #tpu.memory_space<vmem>>, vector<1x16x128xf32>,
    return
  }
  func.func @transform_0(%arg0: i32, %arg1: i32) -> (i32, i32, i32) {
    %c0_i32 = arith.constant 0 : i32
    %c0_i32_0 = arith.constant 0 : i32
    return %arg0, %arg1, %c0_i32 : i32, i32, i32
  }
  func.func @transform_1(%arg0: i32, %arg1: i32) -> (i32, i32) {
    %c0_i32 = arith.constant 0 : i32
    %c0_i32_0 = arith.constant 0 : i32
    %c0_i32_1 = arith.constant 0 : i32
    return %c0_i32, %c0_i32_0 : i32, i32
  }
  func.func @transform_2(%arg0: i32, %arg1: i32) -> (i32, i32) {
    %c0_i32 = arith.constant 0 : i32
    %c0_i32_0 = arith.constant 0 : i32
    %c0_i32_1 = arith.constant 0 : i32
    return %c0_i32, %c0_i32_0 : i32, i32
  }
  func.func @transform_3(%arg0: i32, %arg1: i32) -> (i32, i32) {
    %c0_i32 = arith.constant 0 : i32
    %c0_i32_0 = arith.constant 0 : i32
    %c0_i32_1 = arith.constant 0 : i32
    return %c0_i32, %c0_i32_0 : i32, i32
  }
  func.func @transform_4(%arg0: i32, %arg1: i32) -> (i32, i32) {
    %c0_i32 = arith.constant 0 : i32
    %c0_i32_0 = arith.constant 0 : i32
    %c0_i32_1 = arith.constant 0 : i32
    return %c0_i32, %c0_i32_0 : i32, i32
  }
  func.func @transform_5(%arg0: i32, %arg1: i32) -> (i32, i32) {
    %c0_i32 = arith.constant 0 : i32
    %c0_i32_0 = arith.constant 0 : i32
    %c0_i32_1 = arith.constant 0 : i32
    return %c0_i32, %c0_i32_0 : i32, i32
  }
  func.func @transform_6(%arg0: i32, %arg1: i32) -> (i32, i32) {
    %c0_i32 = arith.constant 0 : i32
    %c0_i32_0 = arith.constant 0 : i32
    %c0_i32_1 = arith.constant 0 : i32
    return %c0_i32, %c0_i32_0 : i32, i32
  }
  func.func @transform_7(%arg0: i32, %arg1: i32) -> (i32, i32, i32) {
    %c0_i32 = arith.constant 0 : i32
    %c0_i32_0 = arith.constant 0 : i32
    return %arg0, %arg1, %c0_i32 : i32, i32, i32
  }
}

</mosaic_0001>

<llo_original>
// kernel: tpu_custom_call.1
$region0: #{tpu_custom_call.1}
  #allocation0 [shape = 'u32[]', space=smem, size = 0x4, offset = 0x4, fixed_abs, tag = 'smem constant byte address 0x4 - core index']
  #allocation1 [shape = 'u32[72,128]{1,0:T(1,128)}', space=vmem, size = 0x9000, scoped, tag = 'internal scratch']
  #allocation2 [shape = 'f32[1,128]{1,0:T(1,128)}', space=vmem, size = 0x200, scoped, tag = 'scratch operand']
  #allocation3 [shape = 'f32[1,128]{1,0:T(1,128)}', space=vmem, size = 0x200, scoped, tag = 'scratch operand']
  %s0 = inlined_call_operand.hbm [shape: f32[2,32,128], index: 0, kind: input, shape index: {}]
  %s1 = inlined_call_operand.hbm [shape: f32[256,128], index: 1, kind: input, shape index: {}]
  %s2 = inlined_call_operand.vmem [shape: f32[1,128], index: 2, kind: input, shape index: {}]
  %s3 = inlined_call_operand.hbm [shape: f32[256,128], index: 3, kind: input, shape index: {}]
  %s4 = inlined_call_operand.vmem [shape: f32[1,128], index: 4, kind: input, shape index: {}]
  %s5 = inlined_call_operand.hbm [shape: f32[128,128], index: 5, kind: input, shape index: {}]
  %s6 = inlined_call_operand.vmem [shape: f32[1,128], index: 6, kind: input, shape index: {}]
  %s7 = inlined_call_operand.hbm [shape: f32[2,32,128], index: 7, kind: output, shape index: {}]
  %s8 = sld [smem:[#allocation0]]
  $region81: #{tpu_custom_call.1} parent=0
    _
  %s10 = ssub.s32 1, %s8
  %s11 = scalar_select 0, %s10, %s8
  $region1: #{tpu_custom_call.1} parent=0
    #allocation4 [shape = 'u8[16384]{0}', space=vmem, size = 0x4000, scoped, tag = 'input window, operand 0']
    #allocation5 [shape = 's32[2]{0}', space=sflag, size = 0x8, scoped, tag = 'scoped memory for tpu_custom_call.1']
    #allocation6 [shape = 's32[2]{0}', space=sflag, size = 0x8, scoped, tag = 'scoped memory for tpu_custom_call.1']
    #allocation7 [shape = 'u8[131072]{0}', space=vmem, size = 0x20000, scoped, tag = 'input window, operand 1, single buffered']
    #allocation8 [shape = 's32[1]{0}', space=sflag, size = 0x4, scoped, tag = 'scoped memory for tpu_custom_call.1']
    #allocation9 [shape = 'u8[131072]{0}', space=vmem, size = 0x20000, scoped, tag = 'input window, operand 3, single buffered']
    #allocation10 [shape = 'u8[65536]{0}', space=vmem, size = 0x10000, scoped, tag = 'input window, operand 5, single buffered']
    #allocation11 [shape = 's32[1]{0}', space=sflag, size = 0x4, scoped, tag = 'scoped memory for tpu_custom_call.1']
    #allocation12 [shape = 'u8[16384]{0}', space=vmem, size = 0x4000, scoped, tag = 'output window, operand 0']
    %12 = vsyncpa [#allocation5], 0
    %s13 = scalar_lea.sflag [#allocation5], 1
    %14 = vsyncpa %s13, 0
    %15 = vsyncpa [#allocation8], 0
    %16 = vsyncpa [#allocation11], 0
    %17 = vsyncpa [#allocation6], 0
    %s18 = scalar_lea.sflag [#allocation6], 1
    %19 = vsyncpa %s18, 0
    loop: start=0, step=1, limit=6
    $region2: #{tpu_custom_call.1} parent=1 // loop_pre_header
      _
    $region3: #{tpu_custom_call.1} parent=1 // loop_header
      %s21 = sphi 0, %s25
      %p22 = scmp.ge.s32.totalorder %s21, 6
      %s28 = sphi 0, %s40
      %s29 = sphi 0, %s36
      %s30 = sphi 0, %s28
      %s31 = sphi 0, %s29
      %s32 = sphi 0, %s30
      %s33 = sphi 0, %s31
      %s45 = sphi 0, %s47
      %s48 = sphi 0, %s45
      %s49 = sphi 0, %s48
      %s65 = sphi 0, %s49
      %s69 = sphi 0, %s69
      %s71 = sphi 0, %s69
      %s72 = sphi 0, %s71
      %s86 = sphi 0, %s72
      %s90 = sphi 0, %s90
      %s92 = sphi 0, %s90
      %s93 = sphi 0, %s92
      %s107 = sphi 0, %s93
      %s111 = sphi 0, %s111
      %s113 = sphi 0, %s111
      %s114 = sphi 0, %s113
      %s128 = sphi 0, %s114
      %s132 = sphi 0, %s132
      %s134 = sphi 0, %s132
      %s135 = sphi 0, %s134
      %s149 = sphi 0, %s135
      %s153 = sphi 0, %s153
      %s155 = sphi 0, %s153
      %s156 = sphi 0, %s155
      %s170 = sphi 0, %s156
      %s174 = sphi 0, %s174
      %s176 = sphi 0, %s174
      %s177 = sphi 0, %s176
      %s191 = sphi 0, %s177
      %s199 = sphi 0, %s201
      %s202 = sphi 0, %s199
      %s203 = sphi 0, %s202
      %s219 = sphi 0, %s203
    $region4: #{tpu_custom_call.1} parent=1 // loop_header_branch
      %24 = sbr.rel (%p22) target = $region8
    $region5: #{tpu_custom_call.1} parent=1 // loop_body
      %s26 = ssub.s32 %s21, 1
      %s27 = ssub.s32 %s21, 2
      %s34 = sadd.s32 1, %s29
      %p35 = scmp.ge.s32.totalorder %s34, 2
      %s36 = scalar_select %p35, 0, %s34
      %s37 = sadd.s32 1, %s28
      %s38 = scalar_select %p35, %s37, %s28
      %p39 = scmp.ge.s32.totalorder %s38, 2
      %s40 = scalar_select %p39, 0, %s38
      %s41 = ssub.s32 %s28, %s40
      %s42 = ssub.s32 %s29, %s36
      %s43 = sor.u32 %s41, %s42
      %p44 = scmp.eq.s32.totalorder %s43, 0
      %s46 = sadd.s32 %s45, 1
      %s47 = scalar_select %p44, %s45, %s46
      %p50 = pneg %p44
      %p51 = scmp.eq.s32.totalorder %s21, 3
      %p52 = por %p50, %p51
      %p53 = scmp.ne.s32.totalorder %s45, %s48
      %p54 = scmp.eq.s32.totalorder %s21, 0
      %p55 = por %p53, %p54
      %p56 = scmp.ne.s32.totalorder %s45, %s48
      %p57 = scmp.eq.s32.totalorder %s26, 3
      %p58 = por %p56, %p57
      %p59 = scmp.ne.s32.totalorder %s48, %s49
      %p60 = scmp.eq.s32.totalorder %s26, 0
      %p61 = por %p59, %p60
      %p62 = scmp.ne.s32.totalorder %s48, %s49
      %p63 = scmp.eq.s32.totalorder %s27, 3
      %p64 = por %p62, %p63
      %p66 = scmp.ne.s32.totalorder %s49, %s65
      %p67 = scmp.eq.s32.totalorder %s27, 0
      %p68 = por %p66, %p67
      %s70 = sadd.s32 %s69, 1
      %p73 = scmp.eq.s32.totalorder %s21, 3
      %p74 = scmp.ne.s32.totalorder %s69, %s71
      %p75 = scmp.eq.s32.totalorder %s21, 0
      %p76 = por %p74, %p75
      %p77 = scmp.ne.s32.totalorder %s69, %s71
      %p78 = scmp.eq.s32.totalorder %s26, 3
      %p79 = por %p77, %p78
      %p80 = scmp.ne.s32.totalorder %s71, %s72
      %p81 = scmp.eq.s32.totalorder %s26, 0
      %p82 = por %p80, %p81
      %p83 = scmp.ne.s32.totalorder %s71, %s72
      %p84 = scmp.eq.s32.totalorder %s27, 3
      %p85 = por %p83, %p84
      %p87 = scmp.ne.s32.totalorder %s72, %s86
      %p88 = scmp.eq.s32.totalorder %s27, 0
      %p89 = por %p87, %p88
      %s91 = sadd.s32 %s90, 1
      %p94 = scmp.eq.s32.totalorder %s21, 3
      %p95 = scmp.ne.s32.totalorder %s90, %s92
      %p96 = scmp.eq.s32.totalorder %s21, 0
      %p97 = por %p95, %p96
      %p98 = scmp.ne.s32.totalorder %s90, %s92
      %p99 = scmp.eq.s32.totalorder %s26, 3
      %p100 = por %p98, %p99
      %p101 = scmp.ne.s32.totalorder %s92, %s93
      %p102 = scmp.eq.s32.totalorder %s26, 0
      %p103 = por %p101, %p102
      %p104 = scmp.ne.s32.totalorder %s92, %s93
      %p105 = scmp.eq.s32.totalorder %s27, 3
      %p106 = por %p104, %p105
      %p108 = scmp.ne.s32.totalorder %s93, %s107
      %p109 = scmp.eq.s32.totalorder %s27, 0
      %p110 = por %p108, %p109
      %s112 = sadd.s32 %s111, 1
      %p115 = scmp.eq.s32.totalorder %s21, 3
      %p116 = scmp.ne.s32.totalorder %s111, %s113
      %p117 = scmp.eq.s32.totalorder %s21, 0
      %p118 = por %p116, %p117
      %p119 = scmp.ne.s32.totalorder %s111, %s113
      %p120 = scmp.eq.s32.totalorder %s26, 3
      %p121 = por %p119, %p120
      %p122 = scmp.ne.s32.totalorder %s113, %s114
      %p123 = scmp.eq.s32.totalorder %s26, 0
      %p124 = por %p122, %p123
      %p125 = scmp.ne.s32.totalorder %s113, %s114
      %p126 = scmp.eq.s32.totalorder %s27, 3
      %p127 = por %p125, %p126
      %p129 = scmp.ne.s32.totalorder %s114, %s128
      %p130 = scmp.eq.s32.totalorder %s27, 0
      %p131 = por %p129, %p130
      %s133 = sadd.s32 %s132, 1
      %p136 = scmp.eq.s32.totalorder %s21, 3
      %p137 = scmp.ne.s32.totalorder %s132, %s134
      %p138 = scmp.eq.s32.totalorder %s21, 0
      %p139 = por %p137, %p138
      %p140 = scmp.ne.s32.totalorder %s132, %s134
      %p141 = scmp.eq.s32.totalorder %s26, 3
      %p142 = por %p140, %p141
      %p143 = scmp.ne.s32.totalorder %s134, %s135
      %p144 = scmp.eq.s32.totalorder %s26, 0
      %p145 = por %p143, %p144
      %p146 = scmp.ne.s32.totalorder %s134, %s135
      %p147 = scmp.eq.s32.totalorder %s27, 3
      %p148 = por %p146, %p147
      %p150 = scmp.ne.s32.totalorder %s135, %s149
      %p151 = scmp.eq.s32.totalorder %s27, 0
      %p152 = por %p150, %p151
      %s154 = sadd.s32 %s153, 1
      %p157 = scmp.eq.s32.totalorder %s21, 3
      %p158 = scmp.ne.s32.totalorder %s153, %s155
      %p159 = scmp.eq.s32.totalorder %s21, 0
      %p160 = por %p158, %p159
      %p161 = scmp.ne.s32.totalorder %s153, %s155
      %p162 = scmp.eq.s32.totalorder %s26, 3
      %p163 = por %p161, %p162
      %p164 = scmp.ne.s32.totalorder %s155, %s156
      %p165 = scmp.eq.s32.totalorder %s26, 0
      %p166 = por %p164, %p165
      %p167 = scmp.ne.s32.totalorder %s155, %s156
      %p168 = scmp.eq.s32.totalorder %s27, 3
      %p169 = por %p167, %p168
      %p171 = scmp.ne.s32.totalorder %s156, %s170
      %p172 = scmp.eq.s32.totalorder %s27, 0
      %p173 = por %p171, %p172
      %s175 = sadd.s32 %s174, 1
      %p178 = scmp.eq.s32.totalorder %s21, 3
      %p179 = scmp.ne.s32.totalorder %s174, %s176
      %p180 = scmp.eq.s32.totalorder %s21, 0
      %p181 = por %p179, %p180
      %p182 = scmp.ne.s32.totalorder %s174, %s176
      %p183 = scmp.eq.s32.totalorder %s26, 3
      %p184 = por %p182, %p183
      %p185 = scmp.ne.s32.totalorder %s176, %s177
      %p186 = scmp.eq.s32.totalorder %s26, 0
      %p187 = por %p185, %p186
      %p188 = scmp.ne.s32.totalorder %s176, %s177
      %p189 = scmp.eq.s32.totalorder %s27, 3
      %p190 = por %p188, %p189
      %p192 = scmp.ne.s32.totalorder %s177, %s191
      %p193 = scmp.eq.s32.totalorder %s27, 0
      %p194 = por %p192, %p193
      %s195 = ssub.s32 %s28, %s40
      %s196 = ssub.s32 %s29, %s36
      %s197 = sor.u32 %s195, %s196
      %p198 = scmp.eq.s32.totalorder %s197, 0
      %s200 = sadd.s32 %s199, 1
      %s201 = scalar_select %p198, %s199, %s200
      %p204 = pneg %p198
      %p205 = scmp.eq.s32.totalorder %s21, 3
      %p206 = por %p204, %p205
      %p207 = scmp.ne.s32.totalorder %s199, %s202
      %p208 = scmp.eq.s32.totalorder %s21, 0
      %p209 = por %p207, %p208
      %p210 = scmp.ne.s32.totalorder %s199, %s202
      %p211 = scmp.eq.s32.totalorder %s26, 3
      %p212 = por %p210, %p211
      %p213 = scmp.ne.s32.totalorder %s202, %s203
      %p214 = scmp.eq.s32.totalorder %s26, 0
      %p215 = por %p213, %p214
      %p216 = scmp.ne.s32.totalorder %s202, %s203
      %p217 = scmp.eq.s32.totalorder %s27, 3
      %p218 = por %p216, %p217
      %p220 = scmp.ne.s32.totalorder %s203, %s219
      %p221 = scmp.eq.s32.totalorder %s27, 0
      %p222 = por %p220, %p221
      %p223 = scmp.le.s32.totalorder 1, %s21
      %p224 = scmp.lt.s32.totalorder %s21, 5
      %p225 = pnand %p223, %p224
      %p226 = pneg %p225
      // Predicated region
      $region9: #{tpu_custom_call.1} parent=5 // pred_check
        _
      $region10: #{tpu_custom_call.1} parent=5 // pred_check_branch
        %228 = sbr.rel (%p225) target = $region12
      $region11: #{tpu_custom_call.1} parent=5 // pred_region
        %s229 = ssub.s32 %s21, 1
        // Predicated region
        $region13: #{tpu_custom_call.1} parent=11 // pred_check
          %p230 = pneg %p82
        $region14: #{tpu_custom_call.1} parent=11 // pred_check_branch
          %232 = sbr.rel (%p230) target = $region16
        $region15: #{tpu_custom_call.1} parent=11 // pred_region
          %234 = vsyncadd [#allocation8], 0
          %s235 = sshll.u32 %s1, 4
          %s236 = int_to_ptr.hbm [resolvable:$true] %s235
          %s237 = sshll.u32 [#allocation7], 4
          %s238 = int_to_ptr.vmem [resolvable:$true] %s237
          %243 = dma.hbm_to_vmem [thread:$0]  %s236, 4096, %s238, [#allocation8], 128, 128, 8
        $region16: #{tpu_custom_call.1} parent=11 // pred_fallthru
          _
        // Predicated region
        $region17: #{tpu_custom_call.1} parent=11 // pred_check
          %p244 = pneg %p103
        $region18: #{tpu_custom_call.1} parent=11 // pred_check_branch
          %246 = sbr.rel (%p244) target = $region20
        $region19: #{tpu_custom_call.1} parent=11 // pred_region
          _
        $region20: #{tpu_custom_call.1} parent=11 // pred_fallthru
          _
        // Predicated region
        $region21: #{tpu_custom_call.1} parent=11 // pred_check
          %p247 = pneg %p124
        $region22: #{tpu_custom_call.1} parent=11 // pred_check_branch
          %249 = sbr.rel (%p247) target = $region24
        $region23: #{tpu_custom_call.1} parent=11 // pred_region
          %251 = vsyncadd [#allocation8], 0
          %s252 = sshll.u32 %s3, 4
          %s253 = int_to_ptr.hbm [resolvable:$true] %s252
          %s254 = sshll.u32 [#allocation9], 4
          %s255 = int_to_ptr.vmem [resolvable:$true] %s254
          %260 = dma.hbm_to_vmem [thread:$0]  %s253, 4096, %s255, [#allocation8], 128, 128, 8
        $region24: #{tpu_custom_call.1} parent=11 // pred_fallthru
          _
        // Predicated region
        $region25: #{tpu_custom_call.1} parent=11 // pred_check
          %p261 = pneg %p145
        $region26: #{tpu_custom_call.1} parent=11 // pred_check_branch
          %263 = sbr.rel (%p261) target = $region28
        $region27: #{tpu_custom_call.1} parent=11 // pred_region
          _
        $region28: #{tpu_custom_call.1} parent=11 // pred_fallthru
          _
        // Predicated region
        $region29: #{tpu_custom_call.1} parent=11 // pred_check
          %p264 = pneg %p166
        $region30: #{tpu_custom_call.1} parent=11 // pred_check_branch
          %266 = sbr.rel (%p264) target = $region32
        $region31: #{tpu_custom_call.1} parent=11 // pred_region
          %268 = vsyncadd [#allocation11], 0
          %s269 = sshll.u32 %s5, 4
          %s270 = int_to_ptr.hbm [resolvable:$true] %s269
          %s271 = sshll.u32 [#allocation10], 4
          %s272 = int_to_ptr.vmem [resolvable:$true] %s271
          %277 = dma.hbm_to_vmem [thread:$0]  %s270, 2048, %s272, [#allocation11], 128, 128, 8
        $region32: #{tpu_custom_call.1} parent=11 // pred_fallthru
          _
        // Predicated region
        $region33: #{tpu_custom_call.1} parent=11 // pred_check
          %p278 = pneg %p187
        $region34: #{tpu_custom_call.1} parent=11 // pred_check_branch
          %280 = sbr.rel (%p278) target = $region36
        $region35: #{tpu_custom_call.1} parent=11 // pred_region
          _
        $region36: #{tpu_custom_call.1} parent=11 // pred_fallthru
          _
      $region12: #{tpu_custom_call.1} parent=5 // pred_fallthru
        _
      %p281 = scmp.lt.s32.totalorder %s21, 4
      // Predicated region
      $region37: #{tpu_custom_call.1} parent=5 // pred_check
        %p282 = pneg %p281
      $region38: #{tpu_custom_call.1} parent=5 // pred_check_branch
        %284 = sbr.rel (%p282) target = $region40
      $region39: #{tpu_custom_call.1} parent=5 // pred_region
        // Predicated region
        $region41: #{tpu_custom_call.1} parent=39 // pred_check
          %p285 = pneg %p55
        $region42: #{tpu_custom_call.1} parent=39 // pred_check_branch
          %287 = sbr.rel (%p285) target = $region44
        $region43: #{tpu_custom_call.1} parent=39 // pred_region
          %s288 = sand.u32 %s45, 1
          %s289 = scalar_lea.sflag [#allocation5], %s288
          %s290 = sand.u32 %s45, 1
          %s291 = smul.addr %s290, 16
          %s292 = scalar_lea.vmem [#allocation4], %s291
          %s293 = smul.u32 2, %s29
          %295 = vsyncadd %s289, 0
          %s296 = smul.addr %s28, 4
          %s297 = sadd.s32 %s293, %s296
          %s298 = smul.addr %s297, 8
          %s299 = scalar_lea.hbm %s0, %s298
          %s300 = sshll.u32 %s299, 4
          %s301 = int_to_ptr.hbm [resolvable:$true] %s300
          %s302 = sshll.u32 %s292, 4
          %s303 = int_to_ptr.vmem [resolvable:$true] %s302
          %308 = dma.hbm_to_vmem [thread:$0]  %s301, 256, %s303, %s289, 128, 128, 8
        $region44: #{tpu_custom_call.1} parent=39 // pred_fallthru
          _
      $region40: #{tpu_custom_call.1} parent=5 // pred_fallthru
        _
      %p309 = scmp.le.s32.totalorder 1, %s21
      %p310 = scmp.lt.s32.totalorder %s21, 5
      %p311 = pnand %p309, %p310
      %p312 = pneg %p311
      // Predicated region
      $region45: #{tpu_custom_call.1} parent=5 // pred_check
        _
      $region46: #{tpu_custom_call.1} parent=5 // pred_check_branch
        %314 = sbr.rel (%p311) target = $region48
      $region47: #{tpu_custom_call.1} parent=5 // pred_region
        %s315 = ssub.s32 %s21, 1
        %s316 = sand.u32 %s48, 1
        %s317 = scalar_lea.sflag [#allocation5], %s316
        %s318 = sand.u32 %s48, 1
        %s319 = smul.addr %s318, 16
        %s320 = scalar_lea.vmem [#allocation4], %s319
        // Predicated region
        $region49: #{tpu_custom_call.1} parent=47 // pred_check
          %p321 = pneg %p61
        $region50: #{tpu_custom_call.1} parent=47 // pred_check_branch
          %323 = sbr.rel (%p321) target = $region52
        $region51: #{tpu_custom_call.1} parent=47 // pred_region
          %325 = dma.done %s317, 256
        $region52: #{tpu_custom_call.1} parent=47 // pred_fallthru
          _
        // Predicated region
        $region53: #{tpu_custom_call.1} parent=47 // pred_check
          %p326 = pneg %p82
        $region54: #{tpu_custom_call.1} parent=47 // pred_check_branch
          %328 = sbr.rel (%p326) target = $region56
        $region55: #{tpu_custom_call.1} parent=47 // pred_region
          %330 = dma.done [#allocation8], 4096
        $region56: #{tpu_custom_call.1} parent=47 // pred_fallthru
          _
        // Predicated region
        $region57: #{tpu_custom_call.1} parent=47 // pred_check
          %p331 = pneg %p124
        $region58: #{tpu_custom_call.1} parent=47 // pred_check_branch
          %333 = sbr.rel (%p331) target = $region60
        $region59: #{tpu_custom_call.1} parent=47 // pred_region
          %335 = dma.done [#allocation8], 4096
        $region60: #{tpu_custom_call.1} parent=47 // pred_fallthru
          _
        // Predicated region
        $region61: #{tpu_custom_call.1} parent=47 // pred_check
          %p336 = pneg %p166
        $region62: #{tpu_custom_call.1} parent=47 // pred_check_branch
          %338 = sbr.rel (%p336) target = $region64
        $region63: #{tpu_custom_call.1} parent=47 // pred_region
          %340 = dma.done [#allocation11], 2048
        $region64: #{tpu_custom_call.1} parent=47 // pred_fallthru
          _
        %s341 = sand.u32 %s48, 1
        %s342 = scalar_lea.sflag [#allocation5], %s341
        %s343 = sand.u32 %s48, 1
        %s344 = smul.addr %s343, 16
        %s345 = scalar_lea.vmem [#allocation4], %s344
        %p346 = pneg %p61
        %p347 = pneg %p58
        %p348 = pneg %p82
        %p349 = pneg %p79
        %p350 = pneg %p103
        %p351 = pneg %p100
        %p352 = pneg %p124
        %p353 = pneg %p121
        %p354 = pneg %p145
        %p355 = pneg %p142
        %p356 = pneg %p166
        %p357 = pneg %p163
        %p358 = pneg %p187
        %p359 = pneg %p184
        %p360 = pneg %p215
        %p361 = pneg %p212
        %s362 = sand.u32 %s202, 1
        %s363 = scalar_lea.sflag [#allocation6], %s362
        %s364 = sand.u32 %s202, 1
        %s365 = smul.addr %s364, 16
        %s366 = scalar_lea.vmem [#allocation12], %s365
        %s367 = smul.u32 2, %s31
        %s368 = smul.u32 2, %s31
        %v369 = vld [vmem:[%s320] sm:$0xff]
        %v370 = vld [vmem:[%s320 + $0x8] sm:$0xff]
        %p371 = scmp.eq.s32.totalorder %s31, 0
        // Predicated region
        $region65: #{tpu_custom_call.1} parent=47 // pred_check
          %p372 = pneg %p371
        $region66: #{tpu_custom_call.1} parent=47 // pred_check_branch
          %374 = sbr.rel (%p372) target = $region68
        $region67: #{tpu_custom_call.1} parent=47 // pred_region
          %375 = vst [vmem:[#allocation2] sm:$0x1] 0.0
          %376 = vst [vmem:[#allocation3] sm:$0x1] 0.0
        $region68: #{tpu_custom_call.1} parent=47 // pred_fallthru
          _
        %v377 = vld [vmem:[#allocation2] sm:$0x1]
        %378 = vst [vmem:[#allocation2 - $0x7] sm:$0x80] %v370
        %vm381 = vcmask 1040384
        %v382 = vrot.slane %v369, 7
        %v383 = vrot.slane %v370, 7
        %v384 = vsel %vm381, %v382, %v383
        %v387 = vsel %vm381, %v377, %v382
        %v388 = vld [vmem:[#allocation7] sm:$0xff]
        %v389 = vld [vmem:[#allocation7 + $0x8] sm:$0xff]
        %v390 = vld [vmem:[#allocation7 + $0x10] sm:$0xff]
        %v391 = vld [vmem:[#allocation7 + $0x18] sm:$0xff]
        %v392 = vld [vmem:[#allocation7 + $0x20] sm:$0xff]
        %v393 = vld [vmem:[#allocation7 + $0x28] sm:$0xff]
        %v394 = vld [vmem:[#allocation7 + $0x30] sm:$0xff]
        %v395 = vld [vmem:[#allocation7 + $0x38] sm:$0xff]
        %v396 = vld [vmem:[#allocation7 + $0x40] sm:$0xff]
        %v397 = vld [vmem:[#allocation7 + $0x48] sm:$0xff]
        %v398 = vld [vmem:[#allocation7 + $0x50] sm:$0xff]
        %v399 = vld [vmem:[#allocation7 + $0x58] sm:$0xff]
        %v400 = vld [vmem:[#allocation7 + $0x60] sm:$0xff]
        %v401 = vld [vmem:[#allocation7 + $0x68] sm:$0xff]
        %v402 = vld [vmem:[#allocation7 + $0x70] sm:$0xff]
        %v403 = vld [vmem:[#allocation7 + $0x78] sm:$0xff]
        %v404 = vld [vmem:[#allocation7 + $0x80] sm:$0xff]
        %v405 = vld [vmem:[#allocation7 + $0x88] sm:$0xff]
        %v406 = vld [vmem:[#allocation7 + $0x90] sm:$0xff]
        %v407 = vld [vmem:[#allocation7 + $0x98] sm:$0xff]
        %v408 = vld [vmem:[#allocation7 + $0xa0] sm:$0xff]
        %v409 = vld [vmem:[#allocation7 + $0xa8] sm:$0xff]
        %v410 = vld [vmem:[#allocation7 + $0xb0] sm:$0xff]
        %v411 = vld [vmem:[#allocation7 + $0xb8] sm:$0xff]
        %v412 = vld [vmem:[#allocation7 + $0xc0] sm:$0xff]
        %v413 = vld [vmem:[#allocation7 + $0xc8] sm:$0xff]
        %v414 = vld [vmem:[#allocation7 + $0xd0] sm:$0xff]
        %v415 = vld [vmem:[#allocation7 + $0xd8] sm:$0xff]
        %v416 = vld [vmem:[#allocation7 + $0xe0] sm:$0xff]
        %v417 = vld [vmem:[#allocation7 + $0xe8] sm:$0xff]
        %v418 = vld [vmem:[#allocation7 + $0xf0] sm:$0xff]
        %v419 = vld [vmem:[#allocation7 + $0xf8] sm:$0xff]
        %v420 = vld [vmem:[%s2] sm:$0x1]
        %v422 = vperm.slane %v420, 0
        %424 = vmatpush.msra.mxu0 %v403
        %425 = vmatpush.msra.mxu0 %v402
        %426 = vmatpush.msra.mxu0 %v401
        %427 = vmatpush.msra.mxu0 %v400
        %428 = vmatpush.msra.mxu0 %v399
        %429 = vmatpush.msra.mxu0 %v398
        %430 = vmatpush.msra.mxu0 %v397
        %431 = vmatpush.msra.mxu0 %v396
        %432 = vmatpush.msra.mxu0 %v395
        %433 = vmatpush.msra.mxu0 %v394
        %434 = vmatpush.msra.mxu0 %v393
        %435 = vmatpush.msra.mxu0 %v392
        %436 = vmatpush.msra.mxu0 %v391
        %437 = vmatpush.msra.mxu0 %v390
        %438 = vmatpush.msra.mxu0 %v389
        %439 = vmatpush.msra.mxu0 %v388
        %440 = vmatmul.f32.gmra.mxu0 %v387
        %v441 = vpop.f32.mrf.mxu0
        %v442 = vadd.f32 %v422, %v441
        %443 = vmatmul.f32.gmra.mxu0 %v384
        %v444 = vpop.f32.mrf.mxu0
        %v445 = vadd.f32 %v422, %v444
        %446 = vdwg.mxu0
        %447 = vmatpush.msra.mxu0 %v419
        %448 = vmatpush.msra.mxu0 %v418
        %449 = vmatpush.msra.mxu0 %v417
        %450 = vmatpush.msra.mxu0 %v416
        %451 = vmatpush.msra.mxu0 %v415
        %452 = vmatpush.msra.mxu0 %v414
        %453 = vmatpush.msra.mxu0 %v413
        %454 = vmatpush.msra.mxu0 %v412
        %455 = vmatpush.msra.mxu0 %v411
        %456 = vmatpush.msra.mxu0 %v410
        %457 = vmatpush.msra.mxu0 %v409
        %458 = vmatpush.msra.mxu0 %v408
        %459 = vmatpush.msra.mxu0 %v407
        %460 = vmatpush.msra.mxu0 %v406
        %461 = vmatpush.msra.mxu0 %v405
        %462 = vmatpush.msra.mxu0 %v404
        %463 = vmatmul.f32.gmra.mxu0 %v369
        %v464 = vpop.f32.mrf.mxu0
        %v465 = vadd.f32 %v442, %v464
        %466 = vmatmul.f32.gmra.mxu0 %v370
        %v467 = vpop.f32.mrf.mxu0
        %v468 = vadd.f32 %v445, %v467
        %469 = vdwg.mxu0
        %v470 = vmax.f32 %v465, 0.0
        %v471 = vmax.f32 %v468, 0.0
        %v472 = vld [vmem:[#allocation3] sm:$0x1]
        %473 = vst [vmem:[#allocation3 - $0x7] sm:$0x80] %v471
        %v476 = vrot.slane %v470, 7
        %v477 = vrot.slane %v471, 7
        %v478 = vsel %vm381, %v476, %v477
        %v481 = vsel %vm381, %v472, %v476
        %v482 = vld [vmem:[#allocation9] sm:$0xff]
        %v483 = vld [vmem:[#allocation9 + $0x8] sm:$0xff]
        %v484 = vld [vmem:[#allocation9 + $0x10] sm:$0xff]
        %v485 = vld [vmem:[#allocation9 + $0x18] sm:$0xff]
        %v486 = vld [vmem:[#allocation9 + $0x20] sm:$0xff]
        %v487 = vld [vmem:[#allocation9 + $0x28] sm:$0xff]
        %v488 = vld [vmem:[#allocation9 + $0x30] sm:$0xff]
        %v489 = vld [vmem:[#allocation9 + $0x38] sm:$0xff]
        %v490 = vld [vmem:[#allocation9 + $0x40] sm:$0xff]
        %v491 = vld [vmem:[#allocation9 + $0x48] sm:$0xff]
        %v492 = vld [vmem:[#allocation9 + $0x50] sm:$0xff]
        %v493 = vld [vmem:[#allocation9 + $0x58] sm:$0xff]
        %v494 = vld [vmem:[#allocation9 + $0x60] sm:$0xff]
        %v495 = vld [vmem:[#allocation9 + $0x68] sm:$0xff]
        %v496 = vld [vmem:[#allocation9 + $0x70] sm:$0xff]
        %v497 = vld [vmem:[#allocation9 + $0x78] sm:$0xff]
        %v498 = vld [vmem:[#allocation9 + $0x80] sm:$0xff]
        %v499 = vld [vmem:[#allocation9 + $0x88] sm:$0xff]
        %v500 = vld [vmem:[#allocation9 + $0x90] sm:$0xff]
        %v501 = vld [vmem:[#allocation9 + $0x98] sm:$0xff]
        %v502 = vld [vmem:[#allocation9 + $0xa0] sm:$0xff]
        %v503 = vld [vmem:[#allocation9 + $0xa8] sm:$0xff]
        %v504 = vld [vmem:[#allocation9 + $0xb0] sm:$0xff]
        %v505 = vld [vmem:[#allocation9 + $0xb8] sm:$0xff]
        %v506 = vld [vmem:[#allocation9 + $0xc0] sm:$0xff]
        %v507 = vld [vmem:[#allocation9 + $0xc8] sm:$0xff]
        %v508 = vld [vmem:[#allocation9 + $0xd0] sm:$0xff]
        %v509 = vld [vmem:[#allocation9 + $0xd8] sm:$0xff]
        %v510 = vld [vmem:[#allocation9 + $0xe0] sm:$0xff]
        %v511 = vld [vmem:[#allocation9 + $0xe8] sm:$0xff]
        %v512 = vld [vmem:[#allocation9 + $0xf0] sm:$0xff]
        %v513 = vld [vmem:[#allocation9 + $0xf8] sm:$0xff]
        %v514 = vld [vmem:[%s4] sm:$0x1]
        %v516 = vperm.slane %v514, 0
        %518 = vmatpush.msra.mxu0 %v497
        %519 = vmatpush.msra.mxu0 %v496
        %520 = vmatpush.msra.mxu0 %v495
        %521 = vmatpush.msra.mxu0 %v494
        %522 = vmatpush.msra.mxu0 %v493
        %523 = vmatpush.msra.mxu0 %v492
        %524 = vmatpush.msra.mxu0 %v491
        %525 = vmatpush.msra.mxu0 %v490
        %526 = vmatpush.msra.mxu0 %v489
        %527 = vmatpush.msra.mxu0 %v488
        %528 = vmatpush.msra.mxu0 %v487
        %529 = vmatpush.msra.mxu0 %v486
        %530 = vmatpush.msra.mxu0 %v485
        %531 = vmatpush.msra.mxu0 %v484
        %532 = vmatpush.msra.mxu0 %v483
        %533 = vmatpush.msra.mxu0 %v482
        %534 = vmatmul.f32.gmra.mxu0 %v481
        %v535 = vpop.f32.mrf.mxu0
        %v536 = vadd.f32 %v516, %v535
        %537 = vmatmul.f32.gmra.mxu0 %v478
        %v538 = vpop.f32.mrf.mxu0
        %v539 = vadd.f32 %v516, %v538
        %540 = vdwg.mxu0
        %541 = vmatpush.msra.mxu0 %v513
        %542 = vmatpush.msra.mxu0 %v512
        %543 = vmatpush.msra.mxu0 %v511
        %544 = vmatpush.msra.mxu0 %v510
        %545 = vmatpush.msra.mxu0 %v509
        %546 = vmatpush.msra.mxu0 %v508
        %547 = vmatpush.msra.mxu0 %v507
        %548 = vmatpush.msra.mxu0 %v506
        %549 = vmatpush.msra.mxu0 %v505
        %550 = vmatpush.msra.mxu0 %v504
        %551 = vmatpush.msra.mxu0 %v503
        %552 = vmatpush.msra.mxu0 %v502
        %553 = vmatpush.msra.mxu0 %v501
        %554 = vmatpush.msra.mxu0 %v500
        %555 = vmatpush.msra.mxu0 %v499
        %556 = vmatpush.msra.mxu0 %v498
        %557 = vmatmul.f32.gmra.mxu0 %v470
        %v558 = vpop.f32.mrf.mxu0
        %v559 = vadd.f32 %v536, %v558
        %560 = vmatmul.f32.gmra.mxu0 %v471
        %v561 = vpop.f32.mrf.mxu0
        %v562 = vadd.f32 %v539, %v561
        %563 = vdwg.mxu0
        %v564 = vmax.f32 %v559, 0.0
        %v565 = vmax.f32 %v562, 0.0
        %v566 = vld [vmem:[#allocation10] sm:$0xff]
        %v567 = vld [vmem:[#allocation10 + $0x8] sm:$0xff]
        %v568 = vld [vmem:[#allocation10 + $0x10] sm:$0xff]
        %v569 = vld [vmem:[#allocation10 + $0x18] sm:$0xff]
        %v570 = vld [vmem:[#allocation10 + $0x20] sm:$0xff]
        %v571 = vld [vmem:[#allocation10 + $0x28] sm:$0xff]
        %v572 = vld [vmem:[#allocation10 + $0x30] sm:$0xff]
        %v573 = vld [vmem:[#allocation10 + $0x38] sm:$0xff]
        %v574 = vld [vmem:[#allocation10 + $0x40] sm:$0xff]
        %v575 = vld [vmem:[#allocation10 + $0x48] sm:$0xff]
        %v576 = vld [vmem:[#allocation10 + $0x50] sm:$0xff]
        %v577 = vld [vmem:[#allocation10 + $0x58] sm:$0xff]
        %v578 = vld [vmem:[#allocation10 + $0x60] sm:$0xff]
        %v579 = vld [vmem:[#allocation10 + $0x68] sm:$0xff]
        %v580 = vld [vmem:[#allocation10 + $0x70] sm:$0xff]
        %v581 = vld [vmem:[#allocation10 + $0x78] sm:$0xff]
        %v582 = vld [vmem:[%s6] sm:$0x1]
        %v584 = vperm.slane %v582, 0
        %586 = vmatpush.msra.mxu0 %v581
        %587 = vmatpush.msra.mxu0 %v580
        %588 = vmatpush.msra.mxu0 %v579
        %589 = vmatpush.msra.mxu0 %v578
        %590 = vmatpush.msra.mxu0 %v577
        %591 = vmatpush.msra.mxu0 %v576
        %592 = vmatpush.msra.mxu0 %v575
        %593 = vmatpush.msra.mxu0 %v574
        %594 = vmatpush.msra.mxu0 %v573
        %595 = vmatpush.msra.mxu0 %v572
        %596 = vmatpush.msra.mxu0 %v571
        %597 = vmatpush.msra.mxu0 %v570
        %598 = vmatpush.msra.mxu0 %v569
        %599 = vmatpush.msra.mxu0 %v568
        %600 = vmatpush.msra.mxu0 %v567
        %601 = vmatpush.msra.mxu0 %v566
        %602 = vmatmul.f32.gmra.mxu0 %v369
        %v603 = vpop.f32.mrf.mxu0
        %v604 = vadd.f32 %v584, %v603
        %605 = vmatmul.f32.gmra.mxu0 %v370
        %v606 = vpop.f32.mrf.mxu0
        %v607 = vadd.f32 %v584, %v606
        %608 = vdwg.mxu0
        %v609 = vadd.f32 %v564, %v604
        %v610 = vadd.f32 %v565, %v607
        %v611 = vmax.f32 %v609, 0.0
        %v612 = vmax.f32 %v610, 0.0
        %613 = vst [vmem:[%s366] sm:$0xff] %v611
        %614 = vst [vmem:[%s366 + $0x8] sm:$0xff] %v612
        %s615 = sand.u32 %s202, 1
        %s616 = scalar_lea.sflag [#allocation6], %s615
        %s617 = sand.u32 %s202, 1
        %s618 = smul.addr %s617, 16
        %s619 = scalar_lea.vmem [#allocation12], %s618
        // Predicated region
        $region69: #{tpu_custom_call.1} parent=47 // pred_check
          %p620 = pneg %p212
        $region70: #{tpu_custom_call.1} parent=47 // pred_check_branch
          %622 = sbr.rel (%p620) target = $region72
        $region71: #{tpu_custom_call.1} parent=47 // pred_region
          %s623 = smul.u32 2, %s31
          %625 = vsyncadd %s616, 0
          %s626 = smul.addr %s30, 4
          %s627 = sadd.s32 %s623, %s626
          %s628 = smul.addr %s627, 8
          %s629 = scalar_lea.hbm %s7, %s628
          %s630 = sshll.u32 %s619, 4
          %s631 = int_to_ptr.vmem [resolvable:$true] %s630
          %s632 = sshll.u32 %s629, 4
          %s633 = int_to_ptr.hbm [resolvable:$true] %s632
          %638 = dma.vmem_to_hbm [thread:$0]  %s631, 256, %s633, %s616, 128, 128, 8
        $region72: #{tpu_custom_call.1} parent=47 // pred_fallthru
          _
      $region48: #{tpu_custom_call.1} parent=5 // pred_fallthru
        _
      %p639 = scmp.le.s32.totalorder 2, %s21
      // Predicated region
      $region73: #{tpu_custom_call.1} parent=5 // pred_check
        %p640 = pneg %p639
      $region74: #{tpu_custom_call.1} parent=5 // pred_check_branch
        %642 = sbr.rel (%p640) target = $region76
      $region75: #{tpu_custom_call.1} parent=5 // pred_region
        %s643 = ssub.s32 %s21, 2
        // Predicated region
        $region77: #{tpu_custom_call.1} parent=75 // pred_check
          %p644 = pneg %p218
        $region78: #{tpu_custom_call.1} parent=75 // pred_check_branch
          %646 = sbr.rel (%p644) target = $region80
        $region79: #{tpu_custom_call.1} parent=75 // pred_region
          %s647 = sand.u32 %s203, 1
          %s648 = scalar_lea.sflag [#allocation6], %s647
          %s649 = sand.u32 %s203, 1
          %s650 = smul.addr %s649, 16
          %s651 = scalar_lea.vmem [#allocation12], %s650
          %653 = dma.done %s648, 256
        $region80: #{tpu_custom_call.1} parent=75 // pred_fallthru
          _
      $region76: #{tpu_custom_call.1} parent=5 // pred_fallthru
        _
    $region6: #{tpu_custom_call.1} parent=1 // loop_footer
      %s25 = sadd.s32 1, %s21
    $region7: #{tpu_custom_call.1} parent=1 // loop_footer_branch
      %20 = sbr.rel target = $region3
    $region8: #{tpu_custom_call.1} parent=1 // loop_exit
      _
    %654 = vsyncpa [#allocation5], 1
    %s655 = scalar_lea.sflag [#allocation5], 1
    %656 = vsyncpa %s655, 1
    %657 = vsyncpa [#allocation8], 1
    %658 = vsyncpa [#allocation11], 1
    %659 = vsyncpa [#allocation6], 1
    %s660 = scalar_lea.sflag [#allocation6], 1
    %661 = vsyncpa %s660, 1

</llo_original>
